<compile_context>
chip_gen: v5e
topology: v5e:2x2
jax: 0.10.0
libtpu: 0.0.40
codegen_flags: <defaults>
</compile_context>

<pallas_src>
from functools import partial

import jax
import jax.numpy as jnp
from jax import lax
from jax.experimental import pallas as pl
from jax.experimental.pallas import tpu as pltpu


def _round_up(a, b):
    return (a + b - 1) // b * b


# ---------------------------------------------------------------------------
# Kernels
# ---------------------------------------------------------------------------
def _fused_kernel(x_ref, w_ref, b_ref, out_ref, *, sub, unroll, compute_dtype):
    # x_ref: (TM, D_in)   w_ref: (D_in, D_in)   b_ref: (1, D_in) f32
    w = w_ref[...]
    b = b_ref[...]                       # f32, broadcasts over rows
    tm = x_ref.shape[0]
    n_full = tm // sub                   # static trip count
    rem = tm - n_full * sub              # static tail chunk (multiple of 8)

    def chunk(r, size):
        xs = x_ref[pl.ds(r, size), :]
        if compute_dtype is not None:
            xs = xs.astype(compute_dtype)    # in-kernel cast, hidden under MXU/DMA
        dec = jnp.dot(xs, w, preferred_element_type=jnp.float32) + b
        out_ref[pl.ds(r, size), :] = dec.astype(out_ref.dtype)

    def body(s, carry):
        chunk(pl.multiple_of(s * sub, sub), sub)
        return carry

    lax.fori_loop(0, n_full, body, 0, unroll=unroll)
    if rem > 0:
        chunk(n_full * sub, rem)


def _two_layer_kernel(x_ref, w1_ref, b1_ref, w2_ref, b2_ref, out_ref, *,
                      sub, unroll, compute_dtype):
    # Structure-faithful path: encoder matmul then decoder matmul.
    w1 = w1_ref[...]                     # (D_in, D_bn)
    w2 = w2_ref[...]                     # (D_bn, D_in)
    b1 = b1_ref[...]                     # (1, D_bn) f32
    b2 = b2_ref[...]                     # (1, D_in) f32
    tm = x_ref.shape[0]
    n_full = tm // sub
    rem = tm - n_full * sub

    def chunk(r, size):
        xs = x_ref[pl.ds(r, size), :]
        if compute_dtype is not None:
            xs = xs.astype(compute_dtype)
        enc = jnp.dot(xs, w1, preferred_element_type=jnp.float32) + b1
        dec = jnp.dot(enc.astype(w2.dtype), w2,
                      preferred_element_type=jnp.float32) + b2
        out_ref[pl.ds(r, size), :] = dec.astype(out_ref.dtype)

    def body(s, carry):
        chunk(pl.multiple_of(s * sub, sub), sub)
        return carry

    lax.fori_loop(0, n_full, body, 0, unroll=unroll)
    if rem > 0:
        chunk(n_full * sub, rem)


# ---------------------------------------------------------------------------
# Wrapper
# ---------------------------------------------------------------------------
def sift_autoencoder(x, w1, b1, w2, b2, *, tm=4096, sub_tm=256,
                     compute_dtype=None, out_dtype=None, fuse=True):
    """SIFTAutoencoder forward.

    x:  [N, d_in]
    w1: [d_bn, d_in], b1: [d_bn]   (PyTorch nn.Linear (out, in) convention)
    w2: [d_in, d_bn], b2: [d_in]

    tm:            rows per grid step (capped to the batch; >=2 steps when the
                   batch allows so v7x can shard across its 2 TensorCores).
    sub_tm:        rows per inner MXU pass (bounds the live intermediate).
    compute_dtype: e.g. jnp.bfloat16 for a low-precision MXU path (any TPU
                   generation; big win on v5e's f32-multipass MXU). x is cast
                   inside the kernel; accumulation stays f32. Expect ~1e-3
                   absolute error vs the f32 reference on this path.
    out_dtype:     output dtype (default: x.dtype).
    fuse:          fold the two bias-linear layers into one matmul (exact,
                   since the module has no nonlinearity in the bottleneck).
    """
    N, d_in = x.shape
    d_bn, d_in_w = w1.shape
    assert d_in_w == d_in, "w1 shape mismatch"
    assert w2.shape == (d_in, d_bn), "w2 shape mismatch"
    out_dtype = x.dtype if out_dtype is None else out_dtype
    w_dtype = x.dtype if compute_dtype is None else compute_dtype
    hi = jax.lax.Precision.HIGHEST

    # --- tiling: big row tile, no padding (cdiv grid + masked partial tile) ---
    N8 = _round_up(N, 8)
    tm = min(_round_up(tm, 8), N8)
    sub = min(_round_up(sub_tm, 8), tm)
    if N8 >= 2 * sub:
        # Keep at least 2 grid steps so dimension_semantics=("parallel",) can
        # shard the grid across both TensorCores on v7x (cheap on 1-TC chips).
        tm = min(tm, _round_up(pl.cdiv(N8, 2), 8))
        sub = min(sub, tm)
    n_full = tm // sub
    unroll = n_full if n_full <= 4 else 4

    grid = (pl.cdiv(N, tm),)
    x_spec = pl.BlockSpec((tm, d_in), lambda i: (i, 0))
    out_spec = pl.BlockSpec((tm, d_in), lambda i: (i, 0))
    compiler_params = pltpu.CompilerParams(
        dimension_semantics=("parallel",))

    if fuse:
        # Fold Linear∘Linear (no activation in between): exact in f32.
        w_f = jnp.dot(w1.T, w2.T, precision=hi).astype(w_dtype)       # (d_in, d_in)
        b_f = (jnp.dot(b1, w2.T, precision=hi) + b2).astype(jnp.float32)
        b_f = b_f.reshape(1, d_in)
        return pl.pallas_call(
            partial(_fused_kernel, sub=sub, unroll=unroll,
                    compute_dtype=compute_dtype),
            out_shape=jax.ShapeDtypeStruct((N, d_in), out_dtype),
            grid_spec=pltpu.PrefetchScalarGridSpec(
                num_scalar_prefetch=0,
                grid=grid,
                in_specs=[
                    x_spec,                                           # x rows
                    pl.BlockSpec((d_in, d_in), lambda i: (0, 0)),     # fused W (resident)
                    pl.BlockSpec((1, d_in), lambda i: (0, 0)),        # fused b
                ],
                out_specs=out_spec),
            compiler_params=compiler_params,
        )(x, w_f, b_f)

    # Unfused (structure-faithful) path.
    w1_t = w1.T.astype(w_dtype)                                       # (d_in, d_bn)
    w2_t = w2.T.astype(w_dtype)                                       # (d_bn, d_in)
    b1_2d = b1.reshape(1, d_bn).astype(jnp.float32)
    b2_2d = b2.reshape(1, d_in).astype(jnp.float32)
    return pl.pallas_call(
        partial(_two_layer_kernel, sub=sub, unroll=unroll,
                compute_dtype=compute_dtype),
        out_shape=jax.ShapeDtypeStruct((N, d_in), out_dtype),
        grid_spec=pltpu.PrefetchScalarGridSpec(
            num_scalar_prefetch=0,
            grid=grid,
            in_specs=[
                x_spec,                                               # x rows
                pl.BlockSpec((d_in, d_bn), lambda i: (0, 0)),         # W1^T (resident)
                pl.BlockSpec((1, d_bn), lambda i: (0, 0)),            # b1
                pl.BlockSpec((d_bn, d_in), lambda i: (0, 0)),         # W2^T (resident)
                pl.BlockSpec((1, d_in), lambda i: (0, 0)),            # b2
            ],
            out_specs=out_spec),
        compiler_params=compiler_params,
    )(x, w1_t, b1_2d, w2_t, b2_2d)


if __name__ == "__main__":
    input_dim = 128
    bottleneck_dim = 256

    key = jax.random.PRNGKey(0)
    kx, kw1, kb1, kw2, kb2, kx2 = jax.random.split(key, 6)

    # Deterministic synthetic parameters (PyTorch nn.Linear shapes).
    w1 = jax.random.normal(kw1, (bottleneck_dim, input_dim), jnp.float32) * 0.05
    b1 = jax.random.normal(kb1, (bottleneck_dim,), jnp.float32) * 0.05
    w2 = jax.random.normal(kw2, (input_dim, bottleneck_dim), jnp.float32) * 0.05
    b2 = jax.random.normal(kb2, (input_dim,), jnp.float32) * 0.05

    hi = jax.lax.Precision.HIGHEST

    def ref(x):
        enc = jnp.dot(x, w1.T, precision=hi) + b1
        return jnp.dot(enc, w2.T, precision=hi) + b2

    # 1) Small batch, fused single-matmul path (default).
    x_small = jax.random.normal(kx, (8, input_dim), jnp.float32)
    out_small = jax.block_until_ready(sift_autoencoder(x_small, w1, b1, w2, b2))
    assert out_small.shape == x_small.shape and out_small.dtype == x_small.dtype
    assert jnp.allclose(out_small, ref(x_small), atol=1e-4, rtol=1e-4), \
        "mismatch vs reference (small batch, fused)"

    # 2) Ragged batch (600 rows): exercises the cdiv grid / masked partial
    #    tile (no wrapper pad/slice), the >=2-step megacore split, and the
    #    sub-chunked inner loop with a static tail chunk.
    x_big = jax.random.normal(kx2, (600, input_dim), jnp.float32)
    out_big = jax.block_until_ready(sift_autoencoder(x_big, w1, b1, w2, b2))
    assert out_big.shape == x_big.shape
    assert jnp.allclose(out_big, ref(x_big), atol=1e-4, rtol=1e-4), \
        "mismatch vs reference (ragged batch, fused)"

    # 3) Unfused two-matmul path (structure-faithful to the nn.Module).
    out_2l = jax.block_until_ready(
        sift_autoencoder(x_big, w1, b1, w2, b2, fuse=False))
    assert jnp.allclose(out_2l, ref(x_big), atol=1e-4, rtol=1e-4), \
        "mismatch vs reference (ragged batch, two-layer)"

    # 4) bf16 compute path (x cast inside the kernel); looser tolerance since
    #    operands are bf16 (accumulation stays f32).
    out_bf = jax.block_until_ready(
        sift_autoencoder(x_big, w1, b1, w2, b2, compute_dtype=jnp.bfloat16))
    assert out_bf.dtype == jnp.float32
    assert float(jnp.max(jnp.abs(out_bf - ref(x_big)))) < 3e-2, \
        "mismatch vs reference (bf16 compute path)"

    print("KERNEL_OK")
</pallas_src>

<mosaic_0001>
module attributes {stable_mosaic.version = 11 : i64} {
  func.func @_fused_kernel(%arg0: i32, %arg1: memref<8x128xf32, #tpu.memory_space<vmem>>, %arg2: memref<128x128xf32, #tpu.memory_space<vmem>>, %arg3: memref<1x128xf32, #tpu.memory_space<vmem>>, %arg4: memref<8x128xf32, #tpu.memory_space<vmem>>) attributes {dimension_semantics = [#tpu.dimension_semantics<parallel>], iteration_bounds = array<i64: 1>, scalar_prefetch = 0 : i64, scratch_operands = 0 : i64, tpu.core_type = #tpu.core_type<tc>, window_params = [{transform_indices = @transform_0, window_bounds = array<i64: 8, 128>}, {pipeline_mode = #tpu.pipeline_mode<synchronous>, transform_indices = @transform_1, window_bounds = array<i64: 128, 128>}, {pipeline_mode = #tpu.pipeline_mode<synchronous>, transform_indices = @transform_2, window_bounds = array<i64: 1, 128>}, {transform_indices = @transform_3, window_bounds = array<i64: 8, 128>}]} {
    %c0 = arith.constant 0 : index
    %c0_0 = arith.constant 0 : index
    %0 = vector.load %arg2[%c0, %c0_0] : memref<128x128xf32, #tpu.memory_space<vmem>>, vector<128x128xf32>
    %c0_1 = arith.constant 0 : index
    %c0_2 = arith.constant 0 : index
    %1 = vector.load %arg3[%c0_1, %c0_2] : memref<1x128xf32, #tpu.memory_space<vmem>>, vector<1x128xf32>
    %c0_i32 = arith.constant 0 : i32
    %c8_i32 = arith.constant 8 : i32
    %2 = arith.muli %c0_i32, %c8_i32 : i32
    %3 = tpu.assume_multiple %2, 8 : i32
    %4 = arith.index_cast %3 : i32 to index
    %c0_3 = arith.constant 0 : index
    %5 = vector.load %arg1[%4, %c0_3] : memref<8x128xf32, #tpu.memory_space<vmem>>, vector<8x128xf32>
    %cst = arith.constant dense<0.000000e+00> : vector<8x128xf32>
    %6 = tpu.matmul %5, %0, %cst {dimension_numbers = #tpu.dot_dimension_numbers<[1], [0], [0], [1], [0, 0, 1, 1], [], []>} : vector<8x128xf32>, vector<128x128xf32>, vector<8x128xf32> -> vector<8x128xf32>
    %7 = vector.broadcast %1 : vector<1x128xf32> to vector<8x128xf32>
    %8 = arith.addf %6, %7 : vector<8x128xf32>
    %9 = arith.index_cast %3 : i32 to index
    %c0_4 = arith.constant 0 : index
    %10 = vector.load %arg4[%9, %c0_4] : memref<8x128xf32, #tpu.memory_space<vmem>>, vector<8x128xf32>
    tpu.vector_store %arg4[%9, %c0_4], %8 {strides = array<i32>} : memref<8x128xf32, #tpu.memory_space<vmem>>, vector<8x128xf32>,
    %c1_i32 = arith.constant 1 : i32
    return
  }
  func.func @transform_0(%arg0: i32) -> (i32, i32) {
    %c0_i32 = arith.constant 0 : i32
    %c0_i32_0 = arith.constant 0 : i32
    return %arg0, %c0_i32 : i32, i32
  }
  func.func @transform_1(%arg0: i32) -> (i32, i32) {
    %c0_i32 = arith.constant 0 : i32
    %c0_i32_0 = arith.constant 0 : i32
    %c0_i32_1 = arith.constant 0 : i32
    return %c0_i32, %c0_i32_0 : i32, i32
  }
  func.func @transform_2(%arg0: i32) -> (i32, i32) {
    %c0_i32 = arith.constant 0 : i32
    %c0_i32_0 = arith.constant 0 : i32
    %c0_i32_1 = arith.constant 0 : i32
    return %c0_i32, %c0_i32_0 : i32, i32
  }
  func.func @transform_3(%arg0: i32) -> (i32, i32) {
    %c0_i32 = arith.constant 0 : i32
    %c0_i32_0 = arith.constant 0 : i32
    return %arg0, %c0_i32 : i32, i32
  }
}

</mosaic_0001>

<llo_original>
// kernel: tpu_custom_call.1
$region0: #{tpu_custom_call.1}
  #allocation0 [shape = 'u32[]', space=smem, size = 0x4, offset = 0x4, fixed_abs, tag = 'smem constant byte address 0x4 - core index']
  #allocation1 [shape = 'u32[72,128]{1,0:T(1,128)}', space=vmem, size = 0x9000, scoped, tag = 'internal scratch']
  %s0 = inlined_call_operand.hbm [shape: f32[8,128], index: 0, kind: input, shape index: {}]
  %s1 = inlined_call_operand.hbm [shape: f32[128,128], index: 1, kind: input, shape index: {}]
  %s2 = inlined_call_operand.vmem [shape: f32[1,128], index: 2, kind: input, shape index: {}]
  %s3 = inlined_call_operand.hbm [shape: f32[8,128], index: 3, kind: output, shape index: {}]
  %s4 = sld [smem:[#allocation0]]
  $region30: #{tpu_custom_call.1} parent=0
    _
  %s6 = ssub.s32 1, %s4
  %s7 = scalar_select 0, %s6, %s4
  $region1: #{tpu_custom_call.1} parent=0
    #allocation2 [shape = 'u8[4096]{0}', space=vmem, size = 0x1000, scoped, tag = 'input window, operand 0, single buffered']
    #allocation3 [shape = 's32[1]{0}', space=sflag, size = 0x4, scoped, tag = 'scoped memory for tpu_custom_call.1']
    #allocation4 [shape = 's32[1]{0}', space=sflag, size = 0x4, scoped, tag = 'scoped memory for tpu_custom_call.1']
    #allocation5 [shape = 'u8[65536]{0}', space=vmem, size = 0x10000, scoped, tag = 'input window, operand 1, single buffered']
    #allocation6 [shape = 's32[1]{0}', space=sflag, size = 0x4, scoped, tag = 'scoped memory for tpu_custom_call.1']
    #allocation7 [shape = 'u8[4096]{0}', space=vmem, size = 0x1000, scoped, tag = 'output window, operand 0, single buffered']
    %8 = vsyncpa [#allocation3], 0
    %9 = vsyncpa [#allocation6], 0
    %10 = vsyncpa [#allocation4], 0
    // Predicated region
    $region2: #{tpu_custom_call.1} parent=1 // pred_check
      _
    $region3: #{tpu_custom_call.1} parent=1 // pred_check_branch
      %12 = sbr.rel (0) target = $region5
    $region4: #{tpu_custom_call.1} parent=1 // pred_region
      %14 = vsyncadd [#allocation3], 0
      %s16 = sshll.u32 %s0, 4
      %s17 = int_to_ptr.hbm [resolvable:$true] %s16
      %s18 = sshll.u32 [#allocation2], 4
      %s19 = int_to_ptr.vmem [resolvable:$true] %s18
      %21 = dma.hbm_to_vmem [thread:$0]  %s17, 128, %s19, [#allocation3]
    $region5: #{tpu_custom_call.1} parent=1 // pred_fallthru
      _
    // Predicated region
    $region6: #{tpu_custom_call.1} parent=1 // pred_check
      _
    $region7: #{tpu_custom_call.1} parent=1 // pred_check_branch
      %23 = sbr.rel (0) target = $region9
    $region8: #{tpu_custom_call.1} parent=1 // pred_region
      %25 = vsyncadd [#allocation6], 0
      %s26 = sshll.u32 %s1, 4
      %s27 = int_to_ptr.hbm [resolvable:$true] %s26
      %s28 = sshll.u32 [#allocation5], 4
      %s29 = int_to_ptr.vmem [resolvable:$true] %s28
      %34 = dma.hbm_to_vmem [thread:$0]  %s27, 2048, %s29, [#allocation6], 128, 128, 8
    $region9: #{tpu_custom_call.1} parent=1 // pred_fallthru
      _
    // Predicated region
    $region10: #{tpu_custom_call.1} parent=1 // pred_check
      _
    $region11: #{tpu_custom_call.1} parent=1 // pred_check_branch
      %36 = sbr.rel (0) target = $region13
    $region12: #{tpu_custom_call.1} parent=1 // pred_region
      _
    $region13: #{tpu_custom_call.1} parent=1 // pred_fallthru
      _
    // Predicated region
    $region14: #{tpu_custom_call.1} parent=1 // pred_check
      _
    $region15: #{tpu_custom_call.1} parent=1 // pred_check_branch
      %38 = sbr.rel (0) target = $region17
    $region16: #{tpu_custom_call.1} parent=1 // pred_region
      %40 = dma.done [#allocation3], 128
    $region17: #{tpu_custom_call.1} parent=1 // pred_fallthru
      _
    // Predicated region
    $region18: #{tpu_custom_call.1} parent=1 // pred_check
      _
    $region19: #{tpu_custom_call.1} parent=1 // pred_check_branch
      %42 = sbr.rel (0) target = $region21
    $region20: #{tpu_custom_call.1} parent=1 // pred_region
      %44 = dma.done [#allocation6], 2048
    $region21: #{tpu_custom_call.1} parent=1 // pred_fallthru
      _
    %v45 = vld [vmem:[#allocation5] sm:$0xff]
    %v46 = vld [vmem:[#allocation5 + $0x8] sm:$0xff]
    %v47 = vld [vmem:[#allocation5 + $0x10] sm:$0xff]
    %v48 = vld [vmem:[#allocation5 + $0x18] sm:$0xff]
    %v49 = vld [vmem:[#allocation5 + $0x20] sm:$0xff]
    %v50 = vld [vmem:[#allocation5 + $0x28] sm:$0xff]
    %v51 = vld [vmem:[#allocation5 + $0x30] sm:$0xff]
    %v52 = vld [vmem:[#allocation5 + $0x38] sm:$0xff]
    %v53 = vld [vmem:[#allocation5 + $0x40] sm:$0xff]
    %v54 = vld [vmem:[#allocation5 + $0x48] sm:$0xff]
    %v55 = vld [vmem:[#allocation5 + $0x50] sm:$0xff]
    %v56 = vld [vmem:[#allocation5 + $0x58] sm:$0xff]
    %v57 = vld [vmem:[#allocation5 + $0x60] sm:$0xff]
    %v58 = vld [vmem:[#allocation5 + $0x68] sm:$0xff]
    %v59 = vld [vmem:[#allocation5 + $0x70] sm:$0xff]
    %v60 = vld [vmem:[#allocation5 + $0x78] sm:$0xff]
    %v61 = vld [vmem:[%s2] sm:$0x1]
    %v62 = vld [vmem:[#allocation2] sm:$0xff]
    %v64 = vperm.slane %v61, 0
    %66 = vmatpush.msra.mxu0 %v60
    %67 = vmatpush.msra.mxu0 %v59
    %68 = vmatpush.msra.mxu0 %v58
    %69 = vmatpush.msra.mxu0 %v57
    %70 = vmatpush.msra.mxu0 %v56
    %71 = vmatpush.msra.mxu0 %v55
    %72 = vmatpush.msra.mxu0 %v54
    %73 = vmatpush.msra.mxu0 %v53
    %74 = vmatpush.msra.mxu0 %v52
    %75 = vmatpush.msra.mxu0 %v51
    %76 = vmatpush.msra.mxu0 %v50
    %77 = vmatpush.msra.mxu0 %v49
    %78 = vmatpush.msra.mxu0 %v48
    %79 = vmatpush.msra.mxu0 %v47
    %80 = vmatpush.msra.mxu0 %v46
    %81 = vmatpush.msra.mxu0 %v45
    %82 = vmatmul.f32.gmra.mxu0 %v62
    %v83 = vpop.f32.mrf.mxu0
    %v84 = vadd.f32 %v64, %v83
    %85 = vdwg.mxu0
    %86 = vst [vmem:[#allocation7] sm:$0xff] %v84
    // Predicated region
    $region22: #{tpu_custom_call.1} parent=1 // pred_check
      _
    $region23: #{tpu_custom_call.1} parent=1 // pred_check_branch
      %88 = sbr.rel (0) target = $region25
    $region24: #{tpu_custom_call.1} parent=1 // pred_region
      %90 = vsyncadd [#allocation4], 0
      %s92 = sshll.u32 [#allocation7], 4
      %s93 = int_to_ptr.vmem [resolvable:$true] %s92
      %s94 = sshll.u32 %s3, 4
      %s95 = int_to_ptr.hbm [resolvable:$true] %s94
      %97 = dma.vmem_to_hbm [thread:$0]  %s93, 128, %s95, [#allocation4]
    $region25: #{tpu_custom_call.1} parent=1 // pred_fallthru
      _
    // Predicated region
    $region26: #{tpu_custom_call.1} parent=1 // pred_check
      _
    $region27: #{tpu_custom_call.1} parent=1 // pred_check_branch
      %99 = sbr.rel (0) target = $region29
    $region28: #{tpu_custom_call.1} parent=1 // pred_region
      %101 = dma.done [#allocation4], 128
    $region29: #{tpu_custom_call.1} parent=1 // pred_fallthru
      _
    %102 = vsyncpa [#allocation3], 1
    %103 = vsyncpa [#allocation6], 1
    %104 = vsyncpa [#allocation4], 1

</llo_original>
